<compile_context>
chip_gen: v5e
topology: v5e:2x2
jax: 0.10.0
libtpu: 0.0.40
codegen_flags: <defaults>
</compile_context>

<pallas_src>
import math
from functools import partial

import jax
import jax.numpy as jnp
from jax.experimental import pallas as pl
from jax.experimental.pallas import tpu as pltpu

_LANE = 128
_IN_BLOCK_BYTES = 2 * 1024 * 1024   # per input block; output block is 2x this


def _sublane(itemsize: int) -> int:
    """Minimum sublane multiple for the given element size."""
    return {4: 8, 2: 16, 1: 32}.get(itemsize, 8)


def _make_kernel(c: int, n_trailing: int):
    """Kernel writing relu(x) into o[:, :c, ...] and relu(-x) into o[:, c:, ...]."""
    tail = (slice(None),) * n_trailing
    lo = (slice(None), slice(0, c)) + tail
    hi = (slice(None), slice(c, 2 * c)) + tail

    def kernel(x_ref, o_ref):
        x = x_ref[...]
        zero = jnp.zeros((), dtype=x.dtype)
        o_ref[lo] = jnp.maximum(x, zero)
        o_ref[hi] = jnp.maximum(-x, zero)

    return kernel


@partial(jax.jit, static_argnames=("dim",))
def crelu(x: jax.Array, dim: int = 1) -> jax.Array:
    """CReLU(x) = concat(relu(x), relu(-x)) along `dim`."""
    shape = x.shape
    ndim = len(shape)
    if dim < 0:
        dim += ndim
    assert 0 <= dim < ndim

    pre = math.prod(shape[:dim])          # collapsed leading dims (layout-free)
    c = shape[dim]
    trailing = shape[dim + 1:]            # kept as-is -> minor dims untouched
    itemsize = x.dtype.itemsize
    total_in_bytes = math.prod(shape) * itemsize

    x_view = x.reshape((pre, c) + trailing)
    out_view_shape = (pre, 2 * c) + trailing
    kernel = _make_kernel(c, len(trailing))

    cost = pl.CostEstimate(
        flops=2 * math.prod(shape),
        transcendentals=0,
        bytes_accessed=3 * total_in_bytes,
    )

    if trailing:
        t_last = trailing[-1]
        mid = trailing[:-1]
        mid_elems = math.prod(mid)
        row_bytes_full = c * mid_elems * t_last * itemsize
        if row_bytes_full <= _IN_BLOCK_BYTES:
            tn = t_last                                   # full extent
        else:
            tn = max(_LANE,
                     (_IN_BLOCK_BYTES // (c * mid_elems * itemsize)) // _LANE * _LANE)
            tn = min(tn, t_last)
        row_bytes = c * mid_elems * tn * itemsize
        tm = max(1, min(pre, _IN_BLOCK_BYTES // max(row_bytes, 1)))

        # Ensure >=2 parallel grid blocks on large arrays (v7x has 2 TCs).
        if (total_in_bytes >= (1 << 20)
                and pl.cdiv(pre, tm) * pl.cdiv(t_last, tn) < 2):
            if pre >= 2:
                tm = -(-pre // 2)
            elif t_last >= 2 * _LANE:
                tn = max(_LANE, (-(-t_last // 2)) // _LANE * _LANE)

        zeros_mid = (0,) * len(mid)

        def idx(i, j):
            return (i, 0) + zeros_mid + (j,)

        in_block = (tm, c) + mid + (tn,)
        out_block = (tm, 2 * c) + mid + (tn,)
        grid = (pl.cdiv(pre, tm), pl.cdiv(t_last, tn))
        semantics = ("parallel", "parallel")
    else:
        # dim is the last axis: 2-D (pre, C) -> (pre, 2C), tile along pre.
        sub = _sublane(itemsize)
        row_bytes = c * itemsize
        tm_cap = max(sub, (_IN_BLOCK_BYTES // max(row_bytes, 1)) // sub * sub)
        tm = pre if pre <= tm_cap else tm_cap

        if (total_in_bytes >= (1 << 20) and pl.cdiv(pre, tm) < 2
                and pre >= 2 * sub):
            tm = max(sub, (-(-pre // 2)) // sub * sub)

        def idx(i):
            return (i, 0)

        in_block = (tm, c)
        out_block = (tm, 2 * c)
        grid = (pl.cdiv(pre, tm),)
        semantics = ("parallel",)

    # Double-buffered input + 2x-sized output; set an explicit scoped-VMEM
    # limit only if a pathological shape pushes past the 16 MiB v5e default.
    block_in_bytes = math.prod(in_block) * itemsize
    vmem_needed = 2 * 3 * block_in_bytes
    vmem_limit = None
    if vmem_needed > 14 * 1024 * 1024:
        vmem_limit = int(min(max(vmem_needed * 5 // 4, 16 * 1024 * 1024),
                             32 * 1024 * 1024))

    out_view = pl.pallas_call(
        kernel,
        out_shape=jax.ShapeDtypeStruct(out_view_shape, x.dtype),
        grid=grid,
        in_specs=[pl.BlockSpec(in_block, idx)],
        out_specs=pl.BlockSpec(out_block, idx),
        compiler_params=pltpu.CompilerParams(
            dimension_semantics=semantics,
            vmem_limit_bytes=vmem_limit),
        cost_estimate=cost,
    )(x_view)

    # Splits `pre` back into the original leading dims (layout-free).
    return out_view.reshape(shape[:dim] + (2 * c,) + shape[dim + 1:])


def _ref_crelu(x, dim=1):
    return jnp.concatenate([jnp.maximum(x, 0), jnp.maximum(-x, 0)], axis=dim)


if __name__ == "__main__":
    key = jax.random.PRNGKey(0)
    k0, k1, k2, k3 = jax.random.split(key, 4)

    # Primary case: NCHW input, concat along channels (PyTorch default dim=1).
    x = jax.random.normal(k0, (2, 4, 16, 16), dtype=jnp.float32)
    out = jax.block_until_ready(crelu(x, dim=1))
    assert out.shape == (2, 8, 16, 16), out.shape
    assert jnp.allclose(out, _ref_crelu(x, dim=1)), "mismatch (NCHW, dim=1)"

    # Odd, non-aligned trailing extents.
    x_odd = jax.random.normal(k1, (2, 3, 5, 7), dtype=jnp.float32)
    out_odd = jax.block_until_ready(crelu(x_odd, dim=1))
    assert out_odd.shape == (2, 6, 5, 7), out_odd.shape
    assert jnp.allclose(out_odd, _ref_crelu(x_odd, dim=1)), "mismatch (odd)"

    # 3-D input, concat along the middle (second-minor) dim.
    x_3d = jax.random.normal(k2, (2, 4, 32), dtype=jnp.float32)
    out_3d = jax.block_until_ready(crelu(x_3d, dim=1))
    assert out_3d.shape == (2, 8, 32), out_3d.shape
    assert jnp.allclose(out_3d, _ref_crelu(x_3d, dim=1)), "mismatch (3-D)"

    # Concat along the last dim, bf16.
    x_last = jax.random.normal(k3, (8, 32), dtype=jnp.bfloat16)
    out_last = jax.block_until_ready(crelu(x_last, dim=-1))
    assert out_last.shape == (8, 64), out_last.shape
    assert jnp.allclose(out_last, _ref_crelu(x_last, dim=-1)), "mismatch (last dim)"

    print("KERNEL_OK")
</pallas_src>

<mosaic_0001>
module attributes {stable_mosaic.version = 11 : i64} {
  func.func @kernel(%arg0: i32, %arg1: i32, %arg2: memref<2x4x16x16xf32, #tpu.memory_space<vmem>>, %arg3: memref<2x8x16x16xf32, #tpu.memory_space<vmem>>) attributes {dimension_semantics = [#tpu.dimension_semantics<parallel>, #tpu.dimension_semantics<parallel>], iteration_bounds = array<i64: 1, 1>, scalar_prefetch = 0 : i64, scratch_operands = 0 : i64, tpu.core_type = #tpu.core_type<tc>, window_params = [{transform_indices = @transform_0, window_bounds = array<i64: 2, 4, 16, 16>}, {transform_indices = @transform_1, window_bounds = array<i64: 2, 8, 16, 16>}]} {
    %c0 = arith.constant 0 : index
    %c0_0 = arith.constant 0 : index
    %c0_1 = arith.constant 0 : index
    %c0_2 = arith.constant 0 : index
    %0 = vector.load %arg2[%c0, %c0_0, %c0_1, %c0_2] : memref<2x4x16x16xf32, #tpu.memory_space<vmem>>, vector<2x4x16x16xf32>
    %cst = arith.constant 0.000000e+00 : f32
    %1 = vector.broadcast %cst : f32 to vector<2x4x16x16xf32>
    %2 = arith.maximumf %0, %1 : vector<2x4x16x16xf32>
    %c0_3 = arith.constant 0 : index
    %c0_4 = arith.constant 0 : index
    %c0_5 = arith.constant 0 : index
    %c0_6 = arith.constant 0 : index
    %3 = vector.load %arg3[%c0_3, %c0_4, %c0_5, %c0_6] : memref<2x8x16x16xf32, #tpu.memory_space<vmem>>, vector<2x4x16x16xf32>
    tpu.vector_store %arg3[%c0_3, %c0_4, %c0_5, %c0_6], %2 {strides = array<i32>} : memref<2x8x16x16xf32, #tpu.memory_space<vmem>>, vector<2x4x16x16xf32>,
    %cst_7 = arith.constant 0.000000e+00 : f32
    %4 = vector.broadcast %cst_7 : f32 to vector<2x4x16x16xf32>
    %5 = arith.subf %4, %0 : vector<2x4x16x16xf32>
    %cst_8 = arith.constant 0.000000e+00 : f32
    %6 = vector.broadcast %cst_8 : f32 to vector<2x4x16x16xf32>
    %7 = arith.maximumf %5, %6 : vector<2x4x16x16xf32>
    %c0_9 = arith.constant 0 : index
    %c4 = arith.constant 4 : index
    %c0_10 = arith.constant 0 : index
    %c0_11 = arith.constant 0 : index
    %8 = vector.load %arg3[%c0_9, %c4, %c0_10, %c0_11] : memref<2x8x16x16xf32, #tpu.memory_space<vmem>>, vector<2x4x16x16xf32>
    tpu.vector_store %arg3[%c0_9, %c4, %c0_10, %c0_11], %7 {strides = array<i32>} : memref<2x8x16x16xf32, #tpu.memory_space<vmem>>, vector<2x4x16x16xf32>,
    return
  }
  func.func @transform_0(%arg0: i32, %arg1: i32) -> (i32, i32, i32, i32) {
    %c0_i32 = arith.constant 0 : i32
    %c0_i32_0 = arith.constant 0 : i32
    %c0_i32_1 = arith.constant 0 : i32
    return %arg0, %c0_i32, %c0_i32_0, %arg1 : i32, i32, i32, i32
  }
  func.func @transform_1(%arg0: i32, %arg1: i32) -> (i32, i32, i32, i32) {
    %c0_i32 = arith.constant 0 : i32
    %c0_i32_0 = arith.constant 0 : i32
    %c0_i32_1 = arith.constant 0 : i32
    return %arg0, %c0_i32, %c0_i32_0, %arg1 : i32, i32, i32, i32
  }
}

</mosaic_0001>

<llo_original>
// kernel: crelu.1
$region0: #{crelu.1}
  #allocation0 [shape = 'u32[]', space=smem, size = 0x4, offset = 0x4, fixed_abs, tag = 'smem constant byte address 0x4 - core index']
  #allocation1 [shape = 'u32[72,128]{1,0:T(1,128)}', space=vmem, size = 0x9000, scoped, tag = 'internal scratch']
  %s0 = inlined_call_operand.hbm [shape: f32[2,4,16,16], index: 0, kind: input, shape index: {}]
  %s1 = inlined_call_operand.hbm [shape: f32[2,8,16,16], index: 1, kind: output, shape index: {}]
  %s2 = sld [smem:[#allocation0]]
  $region18: #{crelu.1} parent=0
    _
  %s4 = ssub.s32 1, %s2
  %s5 = scalar_select 0, %s4, %s2
  $region1: #{crelu.1} parent=0
    #allocation2 [shape = 'u8[65536]{0}', space=vmem, size = 0x10000, scoped, tag = 'input window, operand 0, single buffered']
    #allocation3 [shape = 's32[1]{0}', space=sflag, size = 0x4, scoped, tag = 'scoped memory for crelu.1']
    #allocation4 [shape = 's32[1]{0}', space=sflag, size = 0x4, scoped, tag = 'scoped memory for crelu.1']
    #allocation5 [shape = 'u8[131072]{0}', space=vmem, size = 0x20000, scoped, tag = 'output window, operand 0, single buffered']
    %6 = vsyncpa [#allocation3], 0
    %7 = vsyncpa [#allocation4], 0
    // Predicated region
    $region2: #{crelu.1} parent=1 // pred_check
      _
    $region3: #{crelu.1} parent=1 // pred_check_branch
      %9 = sbr.rel (0) target = $region5
    $region4: #{crelu.1} parent=1 // pred_region
      %11 = vsyncadd [#allocation3], 0
      %s12 = sshll.u32 %s0, 4
      %s13 = int_to_ptr.hbm [resolvable:$true] %s12
      %s14 = sshll.u32 [#allocation2], 4
      %s15 = int_to_ptr.vmem [resolvable:$true] %s14
      %20 = dma.hbm_to_vmem [thread:$0]  %s13, 2048, %s15, [#allocation3], 128, 128, 8
    $region5: #{crelu.1} parent=1 // pred_fallthru
      _
    // Predicated region
    $region6: #{crelu.1} parent=1 // pred_check
      _
    $region7: #{crelu.1} parent=1 // pred_check_branch
      %22 = sbr.rel (0) target = $region9
    $region8: #{crelu.1} parent=1 // pred_region
      %24 = dma.done [#allocation3], 2048
    $region9: #{crelu.1} parent=1 // pred_fallthru
      _
    %v25 = vld [vmem:[#allocation2] sm:$0xff]
    %v26 = vld [vmem:[#allocation2 + $0x8] sm:$0xff]
    %v27 = vld [vmem:[#allocation2 + $0x10] sm:$0xff]
    %v28 = vld [vmem:[#allocation2 + $0x18] sm:$0xff]
    %v29 = vld [vmem:[#allocation2 + $0x20] sm:$0xff]
    %v30 = vld [vmem:[#allocation2 + $0x28] sm:$0xff]
    %v31 = vld [vmem:[#allocation2 + $0x30] sm:$0xff]
    %v32 = vld [vmem:[#allocation2 + $0x38] sm:$0xff]
    %v33 = vld [vmem:[#allocation2 + $0x40] sm:$0xff]
    %v34 = vld [vmem:[#allocation2 + $0x48] sm:$0xff]
    %v35 = vld [vmem:[#allocation2 + $0x50] sm:$0xff]
    %v36 = vld [vmem:[#allocation2 + $0x58] sm:$0xff]
    %v37 = vld [vmem:[#allocation2 + $0x60] sm:$0xff]
    %v38 = vld [vmem:[#allocation2 + $0x68] sm:$0xff]
    %v39 = vld [vmem:[#allocation2 + $0x70] sm:$0xff]
    %v40 = vld [vmem:[#allocation2 + $0x78] sm:$0xff]
    %v41 = vmax.f32 %v25, 0.0
    %v42 = vmax.f32 %v26, 0.0
    %v43 = vmax.f32 %v27, 0.0
    %v44 = vmax.f32 %v28, 0.0
    %v45 = vmax.f32 %v29, 0.0
    %v46 = vmax.f32 %v30, 0.0
    %v47 = vmax.f32 %v31, 0.0
    %v48 = vmax.f32 %v32, 0.0
    %v49 = vmax.f32 %v33, 0.0
    %v50 = vmax.f32 %v34, 0.0
    %v51 = vmax.f32 %v35, 0.0
    %v52 = vmax.f32 %v36, 0.0
    %v53 = vmax.f32 %v37, 0.0
    %v54 = vmax.f32 %v38, 0.0
    %v55 = vmax.f32 %v39, 0.0
    %v56 = vmax.f32 %v40, 0.0
    %vm57 = vcmask 130048
    %58 = vst.msk [vmem:[#allocation5] sm:$0xff] %vm57, %v41
    %59 = vst.msk [vmem:[#allocation5 + $0x8] sm:$0xff] %vm57, %v42
    %60 = vst.msk [vmem:[#allocation5 + $0x10] sm:$0xff] %vm57, %v43
    %61 = vst.msk [vmem:[#allocation5 + $0x18] sm:$0xff] %vm57, %v44
    %62 = vst.msk [vmem:[#allocation5 + $0x20] sm:$0xff] %vm57, %v45
    %63 = vst.msk [vmem:[#allocation5 + $0x28] sm:$0xff] %vm57, %v46
    %64 = vst.msk [vmem:[#allocation5 + $0x30] sm:$0xff] %vm57, %v47
    %65 = vst.msk [vmem:[#allocation5 + $0x38] sm:$0xff] %vm57, %v48
    %66 = vst.msk [vmem:[#allocation5 + $0x80] sm:$0xff] %vm57, %v49
    %67 = vst.msk [vmem:[#allocation5 + $0x88] sm:$0xff] %vm57, %v50
    %68 = vst.msk [vmem:[#allocation5 + $0x90] sm:$0xff] %vm57, %v51
    %69 = vst.msk [vmem:[#allocation5 + $0x98] sm:$0xff] %vm57, %v52
    %70 = vst.msk [vmem:[#allocation5 + $0xa0] sm:$0xff] %vm57, %v53
    %71 = vst.msk [vmem:[#allocation5 + $0xa8] sm:$0xff] %vm57, %v54
    %72 = vst.msk [vmem:[#allocation5 + $0xb0] sm:$0xff] %vm57, %v55
    %73 = vst.msk [vmem:[#allocation5 + $0xb8] sm:$0xff] %vm57, %v56
    %v74 = vsub.f32 0.0, %v25
    %v75 = vsub.f32 0.0, %v26
    %v76 = vsub.f32 0.0, %v27
    %v77 = vsub.f32 0.0, %v28
    %v78 = vsub.f32 0.0, %v29
    %v79 = vsub.f32 0.0, %v30
    %v80 = vsub.f32 0.0, %v31
    %v81 = vsub.f32 0.0, %v32
    %v82 = vsub.f32 0.0, %v33
    %v83 = vsub.f32 0.0, %v34
    %v84 = vsub.f32 0.0, %v35
    %v85 = vsub.f32 0.0, %v36
    %v86 = vsub.f32 0.0, %v37
    %v87 = vsub.f32 0.0, %v38
    %v88 = vsub.f32 0.0, %v39
    %v89 = vsub.f32 0.0, %v40
    %v90 = vmax.f32 %v74, 0.0
    %v91 = vmax.f32 %v75, 0.0
    %v92 = vmax.f32 %v76, 0.0
    %v93 = vmax.f32 %v77, 0.0
    %v94 = vmax.f32 %v78, 0.0
    %v95 = vmax.f32 %v79, 0.0
    %v96 = vmax.f32 %v80, 0.0
    %v97 = vmax.f32 %v81, 0.0
    %v98 = vmax.f32 %v82, 0.0
    %v99 = vmax.f32 %v83, 0.0
    %v100 = vmax.f32 %v84, 0.0
    %v101 = vmax.f32 %v85, 0.0
    %v102 = vmax.f32 %v86, 0.0
    %v103 = vmax.f32 %v87, 0.0
    %v104 = vmax.f32 %v88, 0.0
    %v105 = vmax.f32 %v89, 0.0
    %s106 = scalar_lea.vmem [#allocation5], 64
    %107 = vst.msk [vmem:[%s106] sm:$0xff] %vm57, %v90
    %108 = vst.msk [vmem:[%s106 + $0x8] sm:$0xff] %vm57, %v91
    %109 = vst.msk [vmem:[%s106 + $0x10] sm:$0xff] %vm57, %v92
    %110 = vst.msk [vmem:[%s106 + $0x18] sm:$0xff] %vm57, %v93
    %111 = vst.msk [vmem:[%s106 + $0x20] sm:$0xff] %vm57, %v94
    %112 = vst.msk [vmem:[%s106 + $0x28] sm:$0xff] %vm57, %v95
    %113 = vst.msk [vmem:[%s106 + $0x30] sm:$0xff] %vm57, %v96
    %114 = vst.msk [vmem:[%s106 + $0x38] sm:$0xff] %vm57, %v97
    %115 = vst.msk [vmem:[%s106 + $0x80] sm:$0xff] %vm57, %v98
    %116 = vst.msk [vmem:[%s106 + $0x88] sm:$0xff] %vm57, %v99
    %117 = vst.msk [vmem:[%s106 + $0x90] sm:$0xff] %vm57, %v100
    %118 = vst.msk [vmem:[%s106 + $0x98] sm:$0xff] %vm57, %v101
    %119 = vst.msk [vmem:[%s106 + $0xa0] sm:$0xff] %vm57, %v102
    %120 = vst.msk [vmem:[%s106 + $0xa8] sm:$0xff] %vm57, %v103
    %121 = vst.msk [vmem:[%s106 + $0xb0] sm:$0xff] %vm57, %v104
    %122 = vst.msk [vmem:[%s106 + $0xb8] sm:$0xff] %vm57, %v105
    // Predicated region
    $region10: #{crelu.1} parent=1 // pred_check
      _
    $region11: #{crelu.1} parent=1 // pred_check_branch
      %124 = sbr.rel (0) target = $region13
    $region12: #{crelu.1} parent=1 // pred_region
      %126 = vsyncadd [#allocation4], 0
      %s127 = sshll.u32 [#allocation5], 4
      %s128 = int_to_ptr.vmem [resolvable:$true] %s127
      %s129 = sshll.u32 %s1, 4
      %s130 = int_to_ptr.hbm [resolvable:$true] %s129
      %135 = dma.vmem_to_hbm [thread:$0]  %s128, 4096, %s130, [#allocation4], 128, 128, 8
    $region13: #{crelu.1} parent=1 // pred_fallthru
      _
    // Predicated region
    $region14: #{crelu.1} parent=1 // pred_check
      _
    $region15: #{crelu.1} parent=1 // pred_check_branch
      %137 = sbr.rel (0) target = $region17
    $region16: #{crelu.1} parent=1 // pred_region
      %139 = dma.done [#allocation4], 4096
    $region17: #{crelu.1} parent=1 // pred_fallthru
      _
    %140 = vsyncpa [#allocation3], 1
    %141 = vsyncpa [#allocation4], 1

</llo_original>
